<compile_context>
chip_gen: v6e
topology: v6e:2x2x1
jax: 0.10.0
libtpu: 0.0.40
codegen_flags: <defaults>
</compile_context>

<pallas_src>
import functools

import jax
import jax.numpy as jnp
from jax.experimental import pallas as pl
from jax.experimental.pallas import tpu as pltpu


# ----------------------------------------------------------------------------
# Pallas kernel: one batch element per grid step
# ----------------------------------------------------------------------------
def _se_kernel(x_ref,    # (1, C, P)      f32   one batch plane, P on lanes
               w1_ref,   # (C, Cr_pad)    f32   linear1 weight (transposed, padded)
               b1_ref,   # (1, Cr_pad)    f32   linear1 bias (padded with zeros)
               w2_ref,   # (Cr_pad, C)    f32   linear2 weight (transposed, padded)
               b2_ref,   # (1, C)         f32   linear2 bias
               o_ref):   # (1, C, P)      f32
    x = x_ref[...]                                         # (1, C, P)

    # Squeeze: global average pool over spatial (lane reduction on the XLU).
    pooled = jnp.mean(x, axis=-1)                          # (1, C)

    # Excitation: two tiny linears + ReLU + sigmoid (EUP).
    h = jnp.dot(pooled, w1_ref[...],
                preferred_element_type=jnp.float32) + b1_ref[...]   # (1, Cr_pad)
    h = jnp.maximum(h, 0.0)
    s = jnp.dot(h, w2_ref[...],
                preferred_element_type=jnp.float32) + b2_ref[...]   # (1, C)
    s = jax.nn.sigmoid(s)

    # Channel re-weighting: lane-dense store.
    o_ref[...] = x * s[:, :, None]


# ----------------------------------------------------------------------------
# Wrapper: reshape-only glue (no transposes) + pallas_call
# ----------------------------------------------------------------------------
def squeeze_excitation_forward(x_nchw, params):
    B, C, H, W = x_nchw.shape
    P = H * W
    Cr = params["w1"].shape[0]
    Cr_pad = ((Cr + 7) // 8) * 8                           # sublane-friendly squeeze dim

    x3 = x_nchw.reshape(B, C, P).astype(jnp.float32)       # NCHW -> (B, C, P), no transpose

    # torch Linear weight is (out_features, in_features); transpose for matmul,
    # zero-pad the squeeze dimension (extra cols/rows contribute exactly 0).
    w1p = jnp.zeros((C, Cr_pad), jnp.float32).at[:, :Cr].set(params["w1"].T)
    b1p = jnp.zeros((1, Cr_pad), jnp.float32).at[0, :Cr].set(params["b1"])
    w2p = jnp.zeros((Cr_pad, C), jnp.float32).at[:Cr, :].set(params["w2"].T)
    b2 = params["b2"].reshape(1, C).astype(jnp.float32)

    out = pl.pallas_call(
        _se_kernel,
        out_shape=jax.ShapeDtypeStruct((B, C, P), jnp.float32),
        grid=(B,),
        in_specs=[
            pl.BlockSpec((1, C, P), lambda b: (b, 0, 0)),      # x: one batch plane per step
            pl.BlockSpec((C, Cr_pad), lambda b: (0, 0)),       # w1 (replicated)
            pl.BlockSpec((1, Cr_pad), lambda b: (0, 0)),       # b1
            pl.BlockSpec((Cr_pad, C), lambda b: (0, 0)),       # w2
            pl.BlockSpec((1, C), lambda b: (0, 0)),            # b2
        ],
        out_specs=pl.BlockSpec((1, C, P), lambda b: (b, 0, 0)),
        compiler_params=pltpu.CompilerParams(
            dimension_semantics=("parallel",)),                # megacore split on v7x
    )(x3, w1p, b1p, w2p, b2)

    # TODO(synk): for very large C*H*W per batch element, add a spatial tile
    # grid with a two-phase (accumulate-pool, then reweight) structure so a
    # single plane need not be fully VMEM-resident.
    return out.reshape(B, C, H, W)


# ----------------------------------------------------------------------------
# Pure-JAX reference (mirrors the PyTorch forward) for a correctness check
# ----------------------------------------------------------------------------
def reference_forward(x, p):
    pooled = x.mean(axis=(2, 3))                            # (B, C)
    h = jnp.maximum(pooled @ p["w1"].T + p["b1"], 0.0)
    s = jax.nn.sigmoid(h @ p["w2"].T + p["b2"])
    return x * s[:, :, None, None]


# ----------------------------------------------------------------------------
# Main
# ----------------------------------------------------------------------------
if __name__ == "__main__":
    # Module hyper-params: reduction=16 needs in_channels >= 16.
    B, C, H, W = 2, 32, 16, 16
    reduction = 16
    Cr = C // reduction

    key = jax.random.PRNGKey(0)
    ks_ = jax.random.split(key, 5)
    params = {
        "w1": 0.1 * jax.random.normal(ks_[0], (Cr, C), jnp.float32),   # (out, in)
        "b1": 0.1 * jax.random.normal(ks_[1], (Cr,), jnp.float32),
        "w2": 0.1 * jax.random.normal(ks_[2], (C, Cr), jnp.float32),   # (out, in)
        "b2": 0.1 * jax.random.normal(ks_[3], (C,), jnp.float32),
    }
    x = jax.random.normal(ks_[4], (B, C, H, W), jnp.float32)

    fwd = jax.jit(functools.partial(squeeze_excitation_forward))
    out = fwd(x, params)
    jax.block_until_ready(out)

    ref = reference_forward(x, params)
    assert out.shape == ref.shape == (B, C, H, W)
    assert jnp.allclose(out, ref, rtol=1e-5, atol=1e-5), \
        f"max abs err = {jnp.max(jnp.abs(out - ref))}"

    print("KERNEL_OK")
</pallas_src>

<mosaic_0001>
module attributes {stable_mosaic.version = 11 : i64} {
  func.func @_se_kernel(%arg0: i32, %arg1: memref<1x32x256xf32, #tpu.memory_space<vmem>>, %arg2: memref<32x8xf32, #tpu.memory_space<vmem>>, %arg3: memref<1x8xf32, #tpu.memory_space<vmem>>, %arg4: memref<8x32xf32, #tpu.memory_space<vmem>>, %arg5: memref<1x32xf32, #tpu.memory_space<vmem>>, %arg6: memref<1x32x256xf32, #tpu.memory_space<vmem>>) attributes {dimension_semantics = [#tpu.dimension_semantics<parallel>], iteration_bounds = array<i64: 2>, scalar_prefetch = 0 : i64, scratch_operands = 0 : i64, tpu.core_type = #tpu.core_type<tc>, window_params = [{transform_indices = @transform_0, window_bounds = array<i64: 1, 32, 256>}, {pipeline_mode = #tpu.pipeline_mode<synchronous>, transform_indices = @transform_1, window_bounds = array<i64: 32, 8>}, {pipeline_mode = #tpu.pipeline_mode<synchronous>, transform_indices = @transform_2, window_bounds = array<i64: 1, 8>}, {pipeline_mode = #tpu.pipeline_mode<synchronous>, transform_indices = @transform_3, window_bounds = array<i64: 8, 32>}, {pipeline_mode = #tpu.pipeline_mode<synchronous>, transform_indices = @transform_4, window_bounds = array<i64: 1, 32>}, {transform_indices = @transform_5, window_bounds = array<i64: 1, 32, 256>}]} {
    %c0 = arith.constant 0 : index
    %c0_0 = arith.constant 0 : index
    %c0_1 = arith.constant 0 : index
    %0 = vector.load %arg1[%c0, %c0_0, %c0_1] : memref<1x32x256xf32, #tpu.memory_space<vmem>>, vector<1x32x256xf32>
    %cst = arith.constant dense<0.000000e+00> : vector<1x32xf32>
    %1 = vector.multi_reduction <add>, %0, %cst [2] : vector<1x32x256xf32> to vector<1x32xf32>
    %cst_2 = arith.constant 2.560000e+02 : f32
    %2 = vector.broadcast %cst_2 : f32 to vector<1x32xf32>
    %3 = arith.divf %1, %2 : vector<1x32xf32>
    %c0_3 = arith.constant 0 : index
    %c0_4 = arith.constant 0 : index
    %4 = vector.load %arg2[%c0_3, %c0_4] : memref<32x8xf32, #tpu.memory_space<vmem>>, vector<32x8xf32>
    %cst_5 = arith.constant dense<0.000000e+00> : vector<1x8xf32>
    %5 = tpu.matmul %3, %4, %cst_5 {dimension_numbers = #tpu.dot_dimension_numbers<[1], [0], [0], [1], [0, 0, 1, 1], [], []>} : vector<1x32xf32>, vector<32x8xf32>, vector<1x8xf32> -> vector<1x8xf32>
    %c0_6 = arith.constant 0 : index
    %c0_7 = arith.constant 0 : index
    %6 = vector.load %arg3[%c0_6, %c0_7] : memref<1x8xf32, #tpu.memory_space<vmem>>, vector<1x8xf32>
    %7 = arith.addf %5, %6 : vector<1x8xf32>
    %cst_8 = arith.constant 0.000000e+00 : f32
    %8 = vector.broadcast %cst_8 : f32 to vector<1x8xf32>
    %9 = arith.maximumf %7, %8 : vector<1x8xf32>
    %c0_9 = arith.constant 0 : index
    %c0_10 = arith.constant 0 : index
    %10 = vector.load %arg4[%c0_9, %c0_10] : memref<8x32xf32, #tpu.memory_space<vmem>>, vector<8x32xf32>
    %cst_11 = arith.constant dense<0.000000e+00> : vector<1x32xf32>
    %11 = tpu.matmul %9, %10, %cst_11 {dimension_numbers = #tpu.dot_dimension_numbers<[1], [0], [0], [1], [0, 0, 1, 1], [], []>} : vector<1x8xf32>, vector<8x32xf32>, vector<1x32xf32> -> vector<1x32xf32>
    %c0_12 = arith.constant 0 : index
    %c0_13 = arith.constant 0 : index
    %12 = vector.load %arg5[%c0_12, %c0_13] : memref<1x32xf32, #tpu.memory_space<vmem>>, vector<1x32xf32>
    %13 = arith.addf %11, %12 : vector<1x32xf32>
    %14 = arith.negf %13 : vector<1x32xf32>
    %15 = math.exp %14 : vector<1x32xf32>
    %cst_14 = arith.constant 1.000000e+00 : f32
    %16 = vector.broadcast %cst_14 : f32 to vector<1x32xf32>
    %17 = arith.addf %16, %15 : vector<1x32xf32>
    %18 = arith.divf %16, %17 : vector<1x32xf32>
    %19 = vector.shape_cast %18 : vector<1x32xf32> to vector<1x32x1xf32>
    %20 = vector.broadcast %19 : vector<1x32x1xf32> to vector<1x32x256xf32>
    %21 = arith.mulf %0, %20 : vector<1x32x256xf32>
    %c0_15 = arith.constant 0 : index
    %c0_16 = arith.constant 0 : index
    %c0_17 = arith.constant 0 : index
    %22 = vector.load %arg6[%c0_15, %c0_16, %c0_17] : memref<1x32x256xf32, #tpu.memory_space<vmem>>, vector<1x32x256xf32>
    tpu.vector_store %arg6[%c0_15, %c0_16, %c0_17], %21 {strides = array<i32>} : memref<1x32x256xf32, #tpu.memory_space<vmem>>, vector<1x32x256xf32>,
    return
  }
  func.func @transform_0(%arg0: i32) -> (i32, i32, i32) {
    %c0_i32 = arith.constant 0 : i32
    %c0_i32_0 = arith.constant 0 : i32
    %c0_i32_1 = arith.constant 0 : i32
    return %arg0, %c0_i32, %c0_i32_0 : i32, i32, i32
  }
  func.func @transform_1(%arg0: i32) -> (i32, i32) {
    %c0_i32 = arith.constant 0 : i32
    %c0_i32_0 = arith.constant 0 : i32
    %c0_i32_1 = arith.constant 0 : i32
    return %c0_i32, %c0_i32_0 : i32, i32
  }
  func.func @transform_2(%arg0: i32) -> (i32, i32) {
    %c0_i32 = arith.constant 0 : i32
    %c0_i32_0 = arith.constant 0 : i32
    %c0_i32_1 = arith.constant 0 : i32
    return %c0_i32, %c0_i32_0 : i32, i32
  }
  func.func @transform_3(%arg0: i32) -> (i32, i32) {
    %c0_i32 = arith.constant 0 : i32
    %c0_i32_0 = arith.constant 0 : i32
    %c0_i32_1 = arith.constant 0 : i32
    return %c0_i32, %c0_i32_0 : i32, i32
  }
  func.func @transform_4(%arg0: i32) -> (i32, i32) {
    %c0_i32 = arith.constant 0 : i32
    %c0_i32_0 = arith.constant 0 : i32
    %c0_i32_1 = arith.constant 0 : i32
    return %c0_i32, %c0_i32_0 : i32, i32
  }
  func.func @transform_5(%arg0: i32) -> (i32, i32, i32) {
    %c0_i32 = arith.constant 0 : i32
    %c0_i32_0 = arith.constant 0 : i32
    %c0_i32_1 = arith.constant 0 : i32
    return %arg0, %c0_i32, %c0_i32_0 : i32, i32, i32
  }
}

</mosaic_0001>

<llo_original>
// kernel: squeeze_excitation_forward.1
$region0: #{squeeze_excitation_forward.1}
  #allocation0 [shape = 'u32[]', space=smem, size = 0x4, offset = 0x4, fixed_abs, tag = 'smem constant byte address 0x4 - core index']
  #allocation1 [shape = 'u32[144,128]{1,0:T(1,128)}', space=vmem, size = 0x12000, scoped, tag = 'internal scratch']
  %s0 = inlined_call_operand.vmem [shape: f32[2,32,256], index: 0, kind: input, shape index: {}]
  %s1 = inlined_call_operand.vmem [shape: f32[32,8], index: 1, kind: input, shape index: {}]
  %s2 = inlined_call_operand.vmem [shape: f32[1,8], index: 2, kind: input, shape index: {}]
  %s3 = inlined_call_operand.vmem [shape: f32[8,32], index: 3, kind: input, shape index: {}]
  %s4 = inlined_call_operand.vmem [shape: f32[1,32], index: 4, kind: input, shape index: {}]
  %s5 = inlined_call_operand.vmem [shape: f32[2,32,256], index: 5, kind: output, shape index: {}]
  %s6 = sld [smem:[#allocation0]]
  $region53: #{squeeze_excitation_forward.1} parent=0
    _
  %s8 = ssub.s32 1, %s6
  %s9 = scalar_select 0, %s8, %s6
  loop: start=0, step=1, limit=4
  $region2: #{squeeze_excitation_forward.1} parent=0 // loop_pre_header
    _
  $region3: #{squeeze_excitation_forward.1} parent=0 // loop_header
    %s11 = sphi 0, %s15
    %p12 = scmp.ge.s32.totalorder %s11, 4
    %s21 = sphi 0, %s23
    %s24 = sphi 0, %s21
    %s25 = sphi 0, %s24
    %s41 = sphi 0, %s25
    %s45 = sphi 0, %s45
    %s47 = sphi 0, %s45
    %s48 = sphi 0, %s47
    %s62 = sphi 0, %s48
    %s66 = sphi 0, %s66
    %s68 = sphi 0, %s66
    %s69 = sphi 0, %s68
    %s83 = sphi 0, %s69
    %s87 = sphi 0, %s87
    %s89 = sphi 0, %s87
    %s90 = sphi 0, %s89
    %s104 = sphi 0, %s90
    %s108 = sphi 0, %s108
    %s110 = sphi 0, %s108
    %s111 = sphi 0, %s110
    %s125 = sphi 0, %s111
    %s131 = sphi 0, %s133
    %s134 = sphi 0, %s131
    %s135 = sphi 0, %s134
    %s151 = sphi 0, %s135
  $region4: #{squeeze_excitation_forward.1} parent=0 // loop_header_branch
    %14 = sbr.rel (%p12) target = $region8
  $region5: #{squeeze_excitation_forward.1} parent=0 // loop_body
    %s16 = ssub.s32 %s11, 1
    %s17 = ssub.s32 %s11, 2
    %s18 = sadd.s32 %s11, 1
    %s19 = ssub.s32 %s11, %s18
    %p20 = scmp.eq.s32.totalorder %s19, 0
    %s22 = sadd.s32 %s21, 1
    %s23 = scalar_select %p20, %s21, %s22
    %p26 = pneg %p20
    %p27 = scmp.eq.s32.totalorder %s11, 1
    %p28 = por %p26, %p27
    %p29 = scmp.ne.s32.totalorder %s21, %s24
    %p30 = scmp.eq.s32.totalorder %s11, 0
    %p31 = por %p29, %p30
    %p32 = scmp.ne.s32.totalorder %s21, %s24
    %p33 = scmp.eq.s32.totalorder %s16, 1
    %p34 = por %p32, %p33
    %p35 = scmp.ne.s32.totalorder %s24, %s25
    %p36 = scmp.eq.s32.totalorder %s16, 0
    %p37 = por %p35, %p36
    %p38 = scmp.ne.s32.totalorder %s24, %s25
    %p39 = scmp.eq.s32.totalorder %s17, 1
    %p40 = por %p38, %p39
    %p42 = scmp.ne.s32.totalorder %s25, %s41
    %p43 = scmp.eq.s32.totalorder %s17, 0
    %p44 = por %p42, %p43
    %s46 = sadd.s32 %s45, 1
    %p49 = scmp.eq.s32.totalorder %s11, 1
    %p50 = scmp.ne.s32.totalorder %s45, %s47
    %p51 = scmp.eq.s32.totalorder %s11, 0
    %p52 = por %p50, %p51
    %p53 = scmp.ne.s32.totalorder %s45, %s47
    %p54 = scmp.eq.s32.totalorder %s16, 1
    %p55 = por %p53, %p54
    %p56 = scmp.ne.s32.totalorder %s47, %s48
    %p57 = scmp.eq.s32.totalorder %s16, 0
    %p58 = por %p56, %p57
    %p59 = scmp.ne.s32.totalorder %s47, %s48
    %p60 = scmp.eq.s32.totalorder %s17, 1
    %p61 = por %p59, %p60
    %p63 = scmp.ne.s32.totalorder %s48, %s62
    %p64 = scmp.eq.s32.totalorder %s17, 0
    %p65 = por %p63, %p64
    %s67 = sadd.s32 %s66, 1
    %p70 = scmp.eq.s32.totalorder %s11, 1
    %p71 = scmp.ne.s32.totalorder %s66, %s68
    %p72 = scmp.eq.s32.totalorder %s11, 0
    %p73 = por %p71, %p72
    %p74 = scmp.ne.s32.totalorder %s66, %s68
    %p75 = scmp.eq.s32.totalorder %s16, 1
    %p76 = por %p74, %p75
    %p77 = scmp.ne.s32.totalorder %s68, %s69
    %p78 = scmp.eq.s32.totalorder %s16, 0
    %p79 = por %p77, %p78
    %p80 = scmp.ne.s32.totalorder %s68, %s69
    %p81 = scmp.eq.s32.totalorder %s17, 1
    %p82 = por %p80, %p81
    %p84 = scmp.ne.s32.totalorder %s69, %s83
    %p85 = scmp.eq.s32.totalorder %s17, 0
    %p86 = por %p84, %p85
    %s88 = sadd.s32 %s87, 1
    %p91 = scmp.eq.s32.totalorder %s11, 1
    %p92 = scmp.ne.s32.totalorder %s87, %s89
    %p93 = scmp.eq.s32.totalorder %s11, 0
    %p94 = por %p92, %p93
    %p95 = scmp.ne.s32.totalorder %s87, %s89
    %p96 = scmp.eq.s32.totalorder %s16, 1
    %p97 = por %p95, %p96
    %p98 = scmp.ne.s32.totalorder %s89, %s90
    %p99 = scmp.eq.s32.totalorder %s16, 0
    %p100 = por %p98, %p99
    %p101 = scmp.ne.s32.totalorder %s89, %s90
    %p102 = scmp.eq.s32.totalorder %s17, 1
    %p103 = por %p101, %p102
    %p105 = scmp.ne.s32.totalorder %s90, %s104
    %p106 = scmp.eq.s32.totalorder %s17, 0
    %p107 = por %p105, %p106
    %s109 = sadd.s32 %s108, 1
    %p112 = scmp.eq.s32.totalorder %s11, 1
    %p113 = scmp.ne.s32.totalorder %s108, %s110
    %p114 = scmp.eq.s32.totalorder %s11, 0
    %p115 = por %p113, %p114
    %p116 = scmp.ne.s32.totalorder %s108, %s110
    %p117 = scmp.eq.s32.totalorder %s16, 1
    %p118 = por %p116, %p117
    %p119 = scmp.ne.s32.totalorder %s110, %s111
    %p120 = scmp.eq.s32.totalorder %s16, 0
    %p121 = por %p119, %p120
    %p122 = scmp.ne.s32.totalorder %s110, %s111
    %p123 = scmp.eq.s32.totalorder %s17, 1
    %p124 = por %p122, %p123
    %p126 = scmp.ne.s32.totalorder %s111, %s125
    %p127 = scmp.eq.s32.totalorder %s17, 0
    %p128 = por %p126, %p127
    %s129 = ssub.s32 %s11, %s18
    %p130 = scmp.eq.s32.totalorder %s129, 0
    %s132 = sadd.s32 %s131, 1
    %s133 = scalar_select %p130, %s131, %s132
    %p136 = pneg %p130
    %p137 = scmp.eq.s32.totalorder %s11, 1
    %p138 = por %p136, %p137
    %p139 = scmp.ne.s32.totalorder %s131, %s134
    %p140 = scmp.eq.s32.totalorder %s11, 0
    %p141 = por %p139, %p140
    %p142 = scmp.ne.s32.totalorder %s131, %s134
    %p143 = scmp.eq.s32.totalorder %s16, 1
    %p144 = por %p142, %p143
    %p145 = scmp.ne.s32.totalorder %s134, %s135
    %p146 = scmp.eq.s32.totalorder %s16, 0
    %p147 = por %p145, %p146
    %p148 = scmp.ne.s32.totalorder %s134, %s135
    %p149 = scmp.eq.s32.totalorder %s17, 1
    %p150 = por %p148, %p149
    %p152 = scmp.ne.s32.totalorder %s135, %s151
    %p153 = scmp.eq.s32.totalorder %s17, 0
    %p154 = por %p152, %p153
    %p155 = scmp.le.s32.totalorder 1, %s11
    %p156 = scmp.lt.s32.totalorder %s11, 3
    %p157 = pnand %p155, %p156
    %p158 = pneg %p157
    // Predicated region
    $region9: #{squeeze_excitation_forward.1} parent=5 // pred_check
      _
    $region10: #{squeeze_excitation_forward.1} parent=5 // pred_check_branch
      %160 = sbr.rel (%p157) target = $region12
    $region11: #{squeeze_excitation_forward.1} parent=5 // pred_region
      %s161 = ssub.s32 %s11, 1
      // Predicated region
      $region13: #{squeeze_excitation_forward.1} parent=11 // pred_check
        %p162 = pneg %p58
      $region14: #{squeeze_excitation_forward.1} parent=11 // pred_check_branch
        %164 = sbr.rel (%p162) target = $region16
      $region15: #{squeeze_excitation_forward.1} parent=11 // pred_region
        _
      $region16: #{squeeze_excitation_forward.1} parent=11 // pred_fallthru
        _
      // Predicated region
      $region17: #{squeeze_excitation_forward.1} parent=11 // pred_check
        %p165 = pneg %p79
      $region18: #{squeeze_excitation_forward.1} parent=11 // pred_check_branch
        %167 = sbr.rel (%p165) target = $region20
      $region19: #{squeeze_excitation_forward.1} parent=11 // pred_region
        _
      $region20: #{squeeze_excitation_forward.1} parent=11 // pred_fallthru
        _
      // Predicated region
      $region21: #{squeeze_excitation_forward.1} parent=11 // pred_check
        %p168 = pneg %p100
      $region22: #{squeeze_excitation_forward.1} parent=11 // pred_check_branch
        %170 = sbr.rel (%p168) target = $region24
      $region23: #{squeeze_excitation_forward.1} parent=11 // pred_region
        _
      $region24: #{squeeze_excitation_forward.1} parent=11 // pred_fallthru
        _
      // Predicated region
      $region25: #{squeeze_excitation_forward.1} parent=11 // pred_check
        %p171 = pneg %p121
      $region26: #{squeeze_excitation_forward.1} parent=11 // pred_check_branch
        %173 = sbr.rel (%p171) target = $region28
      $region27: #{squeeze_excitation_forward.1} parent=11 // pred_region
        _
      $region28: #{squeeze_excitation_forward.1} parent=11 // pred_fallthru
        _
    $region12: #{squeeze_excitation_forward.1} parent=5 // pred_fallthru
      _
    %p174 = scmp.lt.s32.totalorder %s11, 2
    // Predicated region
    $region29: #{squeeze_excitation_forward.1} parent=5 // pred_check
      %p175 = pneg %p174
    $region30: #{squeeze_excitation_forward.1} parent=5 // pred_check_branch
      %177 = sbr.rel (%p175) target = $region32
    $region31: #{squeeze_excitation_forward.1} parent=5 // pred_region
      // Predicated region
      $region33: #{squeeze_excitation_forward.1} parent=31 // pred_check
        %p178 = pneg %p31
      $region34: #{squeeze_excitation_forward.1} parent=31 // pred_check_branch
        %180 = sbr.rel (%p178) target = $region36
      $region35: #{squeeze_excitation_forward.1} parent=31 // pred_region
        %p181 = scmp.lt.s32.totalorder %s11, 1
        %s182 = scalar_select %p181, %s11, 1
        %s183 = smul.addr %s182, 8
        %s184 = smul.addr %s183, 8
        %s185 = scalar_lea.vmem %s0, %s184
      $region36: #{squeeze_excitation_forward.1} parent=31 // pred_fallthru
        _
    $region32: #{squeeze_excitation_forward.1} parent=5 // pred_fallthru
      _
    %p186 = scmp.le.s32.totalorder 1, %s11
    %p187 = scmp.lt.s32.totalorder %s11, 3
    %p188 = pnand %p186, %p187
    %p189 = pneg %p188
    // Predicated region
    $region37: #{squeeze_excitation_forward.1} parent=5 // pred_check
      _
    $region38: #{squeeze_excitation_forward.1} parent=5 // pred_check_branch
      %191 = sbr.rel (%p188) target = $region40
    $region39: #{squeeze_excitation_forward.1} parent=5 // pred_region
      %s192 = ssub.s32 %s11, 1
      %p193 = scmp.lt.s32.totalorder %s16, 1
      %s194 = scalar_select %p193, %s16, 1
      %s195 = smul.addr %s194, 8
      %s196 = smul.addr %s195, 8
      %s197 = scalar_lea.vmem %s0, %s196
      %p198 = pneg %p37
      %p199 = pneg %p34
      %p200 = pneg %p58
      %p201 = pneg %p55
      %p202 = pneg %p79
      %p203 = pneg %p76
      %p204 = pneg %p100
      %p205 = pneg %p97
      %p206 = pneg %p121
      %p207 = pneg %p118
      %p208 = pneg %p147
      %p209 = pneg %p144
      %p210 = scmp.lt.s32.totalorder %s16, 1
      %s211 = scalar_select %p210, %s16, 1
      %s212 = smul.addr %s211, 8
      %s213 = smul.addr %s212, 8
      %s214 = scalar_lea.vmem %s5, %s213
      %p215 = scmp.lt.s32.totalorder %s16, 1
      %s216 = scalar_select %p215, %s16, 1
      %s217 = smul.addr %s216, 8
      %s218 = smul.addr %s217, 8
      %s219 = scalar_lea.vmem %s0, %s218
      %p220 = scmp.lt.s32.totalorder %s16, 1
      %s221 = scalar_select %p220, %s16, 1
      %s222 = smul.addr %s221, 8
      %s223 = smul.addr %s222, 8
      %s224 = scalar_lea.vmem %s5, %s223
      %v225 = vld [vmem:[%s219] sm:$0xff]
      %v226 = vld [vmem:[%s219 + $0x8] sm:$0xff]
      %v227 = vld [vmem:[%s219 + $0x10] sm:$0xff]
      %v228 = vld [vmem:[%s219 + $0x18] sm:$0xff]
      %v229 = vld [vmem:[%s219 + $0x20] sm:$0xff]
      %v230 = vld [vmem:[%s219 + $0x28] sm:$0xff]
      %v231 = vld [vmem:[%s219 + $0x30] sm:$0xff]
      %v232 = vld [vmem:[%s219 + $0x38] sm:$0xff]
      %v233 = vadd.f32 %v225, %v226
      %234 = vadd.xlane.f32.xlu0 %v233
      %v235 = vpop.xlane.xlu0 %234
      %v236 = vadd.f32 %v227, %v228
      %237 = vadd.xlane.f32.xlu0 %v236
      %v238 = vpop.xlane.xlu0 %237
      %v239 = vadd.f32 %v229, %v230
      %240 = vadd.xlane.f32.xlu0 %v239
      %v241 = vpop.xlane.xlu0 %240
      %v242 = vadd.f32 %v231, %v232
      %243 = vadd.xlane.f32.xlu0 %v242
      %v244 = vpop.xlane.xlu0 %243
      %v245 = vrcp.pop 256.0
      %v246 = vmul.f32 %v235, %v245
      %v247 = vmul.f32 %v238, %v245
      %v248 = vmul.f32 %v241, %v245
      %v249 = vmul.f32 %v244, %v245
      %v250 = vld [vmem:[%s1] sm:$0xff]
      %v251 = vld [vmem:[%s1 + $0x8] sm:$0xff]
      %v252 = vld [vmem:[%s1 + $0x10] sm:$0xff]
      %v253 = vld [vmem:[%s1 + $0x18] sm:$0xff]
      %v254 = vld [vmem:[%s2] sm:$0x1]
      %v259 = vlaneseq
      %v260 = vand.u32 %v259, 127
      %v261 = vlaneseq
      %v262 = vshrl.u32 %v261, 7
      %v263 = vsub.s32 %v260, %v262
      %v264 = vrot.slane %v246, %v263
      %v265 = vadd.s32 %v260, 4294967288
      %v266 = vlaneseq
      %v267 = vshrl.u32 %v266, 7
      %v268 = vsub.s32 %v265, %v267
      %v269 = vrot.slane %v247, %v268
      %vm270 = vcmask 130112
      %v271 = vsel %vm270, %v269, %v264
      %v272 = vadd.s32 %v260, 4294967280
      %v273 = vlaneseq
      %v274 = vshrl.u32 %v273, 7
      %v275 = vsub.s32 %v272, %v274
      %v276 = vrot.slane %v248, %v275
      %vm277 = vcmask 195712
      %v278 = vsel %vm277, %v276, %v271
      %v279 = vadd.s32 %v260, 4294967272
      %v280 = vlaneseq
      %v281 = vshrl.u32 %v280, 7
      %v282 = vsub.s32 %v279, %v281
      %v283 = vrot.slane %v249, %v282
      %vm284 = vcmask 261312
      %v285 = vsel %vm284, %v283, %v278
      %vm286 = vcmask 261120
      %v287 = vsel %vm286, %v285, 0
      %289 = vmatprep.subr.mxu0 0.0
      %290 = vmatpush1.msra.mxu0 0.0
      %291 = vmatprep.subr.mxu0 0.0
      %292 = vmatpush1.msra.mxu0 0.0
      %293 = vmatprep.subr.mxu0 0.0
      %294 = vmatpush1.msra.mxu0 0.0
      %295 = vmatprep.subr.mxu0 0.0
      %296 = vmatpush1.msra.mxu0 0.0
      %297 = vmatprep.subr.mxu0 0.0
      %298 = vmatpush1.msra.mxu0 0.0
      %299 = vmatprep.subr.mxu0 0.0
      %300 = vmatpush1.msra.mxu0 0.0
      %301 = vmatprep.subr.mxu0 0.0
      %302 = vmatpush1.msra.mxu0 0.0
      %303 = vmatprep.subr.mxu0 0.0
      %304 = vmatpush1.msra.mxu0 0.0
      %305 = vmatprep.subr.mxu0 0.0
      %306 = vmatpush1.msra.mxu0 0.0
      %307 = vmatprep.subr.mxu0 0.0
      %308 = vmatpush1.msra.mxu0 0.0
      %309 = vmatprep.subr.mxu0 0.0
      %310 = vmatpush1.msra.mxu0 0.0
      %311 = vmatprep.subr.mxu0 0.0
      %312 = vmatpush1.msra.mxu0 0.0
      %313 = vmatprep.subr.mxu0 0.0
      %314 = vmatpush1.msra.mxu0 %v253
      %315 = vmatprep.subr.mxu0 0.0
      %316 = vmatpush1.msra.mxu0 %v252
      %317 = vmatprep.subr.mxu0 0.0
      %318 = vmatpush1.msra.mxu0 %v251
      %319 = vmatprep.subr.mxu0 0.0
      %320 = vmatpush1.msra.mxu0 %v250
      %321 = vmatprep.subr.mxu0 0.0
      %322 = vmatpush2.msra.mxu0 0.0
      %323 = vmatprep.subr.mxu0 0.0
      %324 = vmatpush2.msra.mxu0 0.0
      %325 = vmatprep.subr.mxu0 0.0
      %326 = vmatpush2.msra.mxu0 0.0
      %327 = vmatprep.subr.mxu0 0.0
      %328 = vmatpush2.msra.mxu0 0.0
      %329 = vmatprep.subr.mxu0 0.0
      %330 = vmatpush2.msra.mxu0 0.0
      %331 = vmatprep.subr.mxu0 0.0
      %332 = vmatpush2.msra.mxu0 0.0
      %333 = vmatprep.subr.mxu0 0.0
      %334 = vmatpush2.msra.mxu0 0.0
      %335 = vmatprep.subr.mxu0 0.0
      %336 = vmatpush2.msra.mxu0 0.0
      %337 = vmatprep.subr.mxu0 0.0
      %338 = vmatpush2.msra.mxu0 0.0
      %339 = vmatprep.subr.mxu0 0.0
      %340 = vmatpush2.msra.mxu0 0.0
      %341 = vmatprep.subr.mxu0 0.0
      %342 = vmatpush2.msra.mxu0 0.0
      %343 = vmatprep.subr.mxu0 0.0
      %344 = vmatpush2.msra.mxu0 0.0
      %345 = vmatprep.subr.mxu0 0.0
      %346 = vmatpush2.msra.mxu0 0.0
      %347 = vmatprep.subr.mxu0 0.0
      %348 = vmatpush2.msra.mxu0 0.0
      %349 = vmatprep.subr.mxu0 0.0
      %350 = vmatpush2.msra.mxu0 0.0
      %351 = vmatprep.subr.mxu0 0.0
      %352 = vmatpush2.msra.mxu0 0.0
      %353 = vmatprep.mubr.f32.mxu0 0.0
      %354 = vmatmul.mubr.f32.gmra.mxu0 %v287
      %v355 = vpop.f32.mrf.mxu0
      %v356 = vadd.f32 %v254, %v355
      %v357 = vpop.f32.mrf.mxu0
      %358 = vdwg.mxu0
      %v359 = vmax.f32 %v356, 0.0
      %v360 = vld [vmem:[%s3] sm:$0xff]
      %v361 = vld [vmem:[%s4] sm:$0x1]
      %vm362 = vcmask 64512
      %v364 = vsel %vm362, %v359, 0
      %366 = vmatprep.subr.mxu0 0.0
      %367 = vmatpush1.msra.mxu0 0.0
      %368 = vmatprep.subr.mxu0 0.0
      %369 = vmatpush1.msra.mxu0 0.0
      %370 = vmatprep.subr.mxu0 0.0
      %371 = vmatpush1.msra.mxu0 0.0
      %372 = vmatprep.subr.mxu0 0.0
      %373 = vmatpush1.msra.mxu0 0.0
      %374 = vmatprep.subr.mxu0 0.0
      %375 = vmatpush1.msra.mxu0 0.0
      %376 = vmatprep.subr.mxu0 0.0
      %377 = vmatpush1.msra.mxu0 0.0
      %378 = vmatprep.subr.mxu0 0.0
      %379 = vmatpush1.msra.mxu0 0.0
      %380 = vmatprep.subr.mxu0 0.0
      %381 = vmatpush1.msra.mxu0 0.0
      %382 = vmatprep.subr.mxu0 0.0
      %383 = vmatpush1.msra.mxu0 0.0
      %384 = vmatprep.subr.mxu0 0.0
      %385 = vmatpush1.msra.mxu0 0.0
      %386 = vmatprep.subr.mxu0 0.0
      %387 = vmatpush1.msra.mxu0 0.0
      %388 = vmatprep.subr.mxu0 0.0
      %389 = vmatpush1.msra.mxu0 0.0
      %390 = vmatprep.subr.mxu0 0.0
      %391 = vmatpush1.msra.mxu0 0.0
      %392 = vmatprep.subr.mxu0 0.0
      %393 = vmatpush1.msra.mxu0 0.0
      %394 = vmatprep.subr.mxu0 0.0
      %395 = vmatpush1.msra.mxu0 0.0
      %396 = vmatprep.subr.mxu0 0.0
      %397 = vmatpush1.msra.mxu0 %v360
      %398 = vmatprep.subr.mxu0 0.0
      %399 = vmatpush2.msra.mxu0 0.0
      %400 = vmatprep.subr.mxu0 0.0
      %401 = vmatpush2.msra.mxu0 0.0
      %402 = vmatprep.subr.mxu0 0.0
      %403 = vmatpush2.msra.mxu0 0.0
      %404 = vmatprep.subr.mxu0 0.0
      %405 = vmatpush2.msra.mxu0 0.0
      %406 = vmatprep.subr.mxu0 0.0
      %407 = vmatpush2.msra.mxu0 0.0
      %408 = vmatprep.subr.mxu0 0.0
      %409 = vmatpush2.msra.mxu0 0.0
      %410 = vmatprep.subr.mxu0 0.0
      %411 = vmatpush2.msra.mxu0 0.0
      %412 = vmatprep.subr.mxu0 0.0
      %413 = vmatpush2.msra.mxu0 0.0
      %414 = vmatprep.subr.mxu0 0.0
      %415 = vmatpush2.msra.mxu0 0.0
      %416 = vmatprep.subr.mxu0 0.0
      %417 = vmatpush2.msra.mxu0 0.0
      %418 = vmatprep.subr.mxu0 0.0
      %419 = vmatpush2.msra.mxu0 0.0
      %420 = vmatprep.subr.mxu0 0.0
      %421 = vmatpush2.msra.mxu0 0.0
      %422 = vmatprep.subr.mxu0 0.0
      %423 = vmatpush2.msra.mxu0 0.0
      %424 = vmatprep.subr.mxu0 0.0
      %425 = vmatpush2.msra.mxu0 0.0
      %426 = vmatprep.subr.mxu0 0.0
      %427 = vmatpush2.msra.mxu0 0.0
      %428 = vmatprep.subr.mxu0 0.0
      %429 = vmatpush2.msra.mxu0 0.0
      %430 = vmatprep.mubr.f32.mxu0 0.0
      %431 = vmatmul.mubr.f32.gmra.mxu0 %v364
      %v432 = vpop.f32.mrf.mxu0
      %v433 = vadd.f32 %v361, %v432
      %v434 = vpop.f32.mrf.mxu0
      %435 = vdwg.mxu0
      %v436 = vxor.u32 %v433, 2147483648
      %v437 = vmul.f32 %v436, 1.442695
      %v438 = vpow.pop %v437
      %v439 = vadd.f32 %v438, 1.0
      %v440 = vrcp.pop %v439
      %v441 = vmul.f32 1.0, %v440
      %v442 = vlaneseq
      %v443 = vshrl.u32 %v442, 7
      %v444 = vsub.s32 0, %v443
      %v445 = vrot.slane %v441, %v444
      %447 = vbcast.lane.b32.xlu0 %v445, 256
      %v448 = vpop.permute.xlu0 %447
      %s450 = sor.u32 256, 8
      %451 = vbcast.lane.b32.xlu0 %v445, %s450
      %v452 = vpop.permute.xlu0 %451
      %s454 = sor.u32 256, 16
      %455 = vbcast.lane.b32.xlu0 %v445, %s454
      %v456 = vpop.permute.xlu0 %455
      %s458 = sor.u32 256, 24
      %459 = vbcast.lane.b32.xlu0 %v445, %s458
      %v460 = vpop.permute.xlu0 %459
      %v461 = vmul.f32 %v225, %v448
      %v462 = vmul.f32 %v226, %v448
      %v463 = vmul.f32 %v227, %v452
      %v464 = vmul.f32 %v228, %v452
      %v465 = vmul.f32 %v229, %v456
      %v466 = vmul.f32 %v230, %v456
      %v467 = vmul.f32 %v231, %v460
      %v468 = vmul.f32 %v232, %v460
      %469 = vst [vmem:[%s224] sm:$0xff] %v461
      %470 = vst [vmem:[%s224 + $0x8] sm:$0xff] %v462
      %471 = vst [vmem:[%s224 + $0x10] sm:$0xff] %v463
      %472 = vst [vmem:[%s224 + $0x18] sm:$0xff] %v464
      %473 = vst [vmem:[%s224 + $0x20] sm:$0xff] %v465
      %474 = vst [vmem:[%s224 + $0x28] sm:$0xff] %v466
      %475 = vst [vmem:[%s224 + $0x30] sm:$0xff] %v467
      %476 = vst [vmem:[%s224 + $0x38] sm:$0xff] %v468
      %p477 = scmp.lt.s32.totalorder %s16, 1
      %s478 = scalar_select %p477, %s16, 1
      %s479 = smul.addr %s478, 8
      %s480 = smul.addr %s479, 8
      %s481 = scalar_lea.vmem %s5, %s480
      // Predicated region
      $region41: #{squeeze_excitation_forward.1} parent=39 // pred_check
        %p482 = pneg %p144
      $region42: #{squeeze_excitation_forward.1} parent=39 // pred_check_branch
        %484 = sbr.rel (%p482) target = $region44
      $region43: #{squeeze_excitation_forward.1} parent=39 // pred_region
        _
      $region44: #{squeeze_excitation_forward.1} parent=39 // pred_fallthru
        _
    $region40: #{squeeze_excitation_forward.1} parent=5 // pred_fallthru
      _
    %p485 = scmp.le.s32.totalorder 2, %s11
    // Predicated region
    $region45: #{squeeze_excitation_forward.1} parent=5 // pred_check
      %p486 = pneg %p485
    $region46: #{squeeze_excitation_forward.1} parent=5 // pred_check_branch
      %488 = sbr.rel (%p486) target = $region48
    $region47: #{squeeze_excitation_forward.1} parent=5 // pred_region
      %s489 = ssub.s32 %s11, 2
      // Predicated region
      $region49: #{squeeze_excitation_forward.1} parent=47 // pred_check
        %p490 = pneg %p150
      $region50: #{squeeze_excitation_forward.1} parent=47 // pred_check_branch
        %492 = sbr.rel (%p490) target = $region52
      $region51: #{squeeze_excitation_forward.1} parent=47 // pred_region
        %p493 = scmp.lt.s32.totalorder %s17, 1
        %s494 = scalar_select %p493, %s17, 1
        %s495 = smul.addr %s494, 8
        %s496 = smul.addr %s495, 8
        %s497 = scalar_lea.vmem %s5, %s496
      $region52: #{squeeze_excitation_forward.1} parent=47 // pred_fallthru
        _
    $region48: #{squeeze_excitation_forward.1} parent=5 // pred_fallthru
      _
  $region6: #{squeeze_excitation_forward.1} parent=0 // loop_footer
    %s15 = sadd.s32 1, %s11
  $region7: #{squeeze_excitation_forward.1} parent=0 // loop_footer_branch
    %10 = sbr.rel target = $region3
  $region8: #{squeeze_excitation_forward.1} parent=0 // loop_exit
    _

</llo_original>
